<compile_context>
chip_gen: v5e
topology: v5e:2x2
jax: 0.10.0
libtpu: 0.0.40
codegen_flags: <defaults>
</compile_context>

<pallas_src>
import functools
import math

import jax
import jax.numpy as jnp
import numpy as np
from jax.experimental import pallas as pl
from jax.experimental.pallas import tpu as pltpu

IGNORE_INDEX = -100
LOG_CLAMP = math.log(1e-8)   # log of the softmax clamp used by the PyTorch code
TIME_TILE = 4096             # lane-axis tile (multiple of 128)


def _combined_loss_kernel(*refs, tau, t_total, compute_tmse, num_stages, use_roll):
    """refs = (tgt_ref, x_ref_0..x_ref_{S-1}, out_ref, carry_ref)
       tgt_ref:   (B, 1, TB) i32   targets tile (shared by all stages).
       x_ref_s:   (B, C, TB)       logits tile of stage s (native dtype).
       out_ref:   (S, 3)     f32   SMEM, resident across the grid; accumulates
                                   [ce_sum, valid_count, tmse_sum] per stage.
       carry_ref: (S, B, C, 1) f32 VMEM scratch: last log-prob column of the
                                   previous time tile, per stage."""
    tgt_ref = refs[0]
    x_refs = refs[1:1 + num_stages]
    out_ref = refs[1 + num_stages]
    carry_ref = refs[2 + num_stages]

    B, C, TB = x_refs[0].shape
    t_id = pl.program_id(0)
    t_off = t_id * TB                                   # global time of lane 0

    @pl.when(t_id == 0)
    def _init():
        for s in range(num_stages):
            out_ref[s, 0] = jnp.float32(0.0)
            out_ref[s, 1] = jnp.float32(0.0)
            out_ref[s, 2] = jnp.float32(0.0)
        carry_ref[...] = jnp.zeros_like(carry_ref)

    # One lane-index vector and one class-index vector; everything else is
    # derived by broadcasting (JAX does not CSE broadcast_in_dim).
    lane = jax.lax.broadcasted_iota(jnp.int32, (1, 1, TB), 2)
    gt = t_off + lane                                   # global time per lane
    in_range = gt < t_total                             # mask DMA-padded lanes
    cls = jax.lax.broadcasted_iota(jnp.int32, (1, C, 1), 1)

    tgt = tgt_ref[...]                                  # (B, 1, TB)
    valid = jnp.logical_and(tgt != IGNORE_INDEX, in_range)
    valid_f = jnp.sum(valid.astype(jnp.float32))
    tau2 = jnp.float32(tau * tau)
    log_clamp = jnp.float32(LOG_CLAMP)

    for s in range(num_stages):                         # fused stages, one tile pass
        x = x_refs[s][...].astype(jnp.float32)          # (B, C, TB)

        # numerically stable log-softmax over the class (sublane) axis
        m = jnp.max(x, axis=1, keepdims=True)
        lse = m + jnp.log(jnp.sum(jnp.exp(x - m), axis=1, keepdims=True))
        xm = x - lse                                    # log_softmax, reused below

        # cross entropy with ignore_index (one-hot gather via class iota)
        picked = jnp.sum(jnp.where(cls == tgt, xm, 0.0), axis=1, keepdims=True)
        ce_sum = -jnp.sum(jnp.where(valid, picked, 0.0))
        out_ref[s, 0] = out_ref[s, 0] + ce_sum
        out_ref[s, 1] = out_ref[s, 1] + valid_f

        # temporal smoothing: clamp(|d log(clamp(softmax,1e-8)) / dt|^2, tau^2)
        if compute_tmse:
            lp = jnp.maximum(xm, log_clamp)             # == log(clamp(softmax,1e-8))
            if use_roll:
                # prev[t] = lp[t-1]; lane 0 comes from the carried last column
                # of the previous time tile (XLU roll keeps the VPU full-width).
                prev = pltpu.roll(lp, shift=1, axis=2)
                prev = jnp.where(lane == 0, carry_ref[s], prev)
                d = lp - prev
                dsq = jnp.minimum(d * d, tau2)
                dmask = jnp.logical_and(gt >= 1, in_range)
                tmse = jnp.sum(jnp.where(dmask, dsq, 0.0))
            else:
                # fallback for lane-unaligned (small single-tile) shapes
                d_in = lp[:, :, 1:] - lp[:, :, :TB - 1]
                dsq_in = jnp.minimum(d_in * d_in, tau2)
                tmse = jnp.sum(jnp.where(gt[:, :, 1:] < t_total, dsq_in, 0.0))
                d_seam = lp[:, :, 0:1] - carry_ref[s]
                dsq_seam = jnp.minimum(d_seam * d_seam, tau2)
                seam_ok = jnp.logical_and(t_off >= 1, t_off < t_total)
                tmse = tmse + jnp.where(seam_ok, jnp.sum(dsq_seam), 0.0)
            out_ref[s, 2] = out_ref[s, 2] + tmse
            # carry the last log-prob column for the next time tile
            carry_ref[s] = lp[:, :, TB - 1:TB]


def _per_stage_sums(preds, tgt_b1t, *, tau, compute_tmse, time_tile):
    """preds: tuple of S (B, C, T) arrays; tgt_b1t: (B, 1, T) i32.
       Returns (S, 3) f32 [ce_sum, valid_count, tmse_sum] per stage."""
    S = len(preds)
    B, C, T = preds[0].shape
    TB = T if T <= time_tile else time_tile
    NT = pl.cdiv(T, TB)
    use_roll = (TB % 128 == 0)

    kernel = functools.partial(
        _combined_loss_kernel, tau=float(tau), t_total=T,
        compute_tmse=compute_tmse, num_stages=S, use_roll=use_roll)

    in_specs = [pl.BlockSpec((B, 1, TB), lambda t: (0, 0, t))]          # targets
    in_specs += [pl.BlockSpec((B, C, TB), lambda t: (0, 0, t))          # heads
                 for _ in range(S)]

    itemsize = np.dtype(preds[0].dtype).itemsize
    cost = pl.CostEstimate(
        flops=int(16 * S * B * C * T),
        transcendentals=int(S * B * T * (C + 1)),
        bytes_accessed=int(itemsize * S * B * C * T + 4 * B * T + 4 * S * 3))

    return pl.pallas_call(
        kernel,
        out_shape=jax.ShapeDtypeStruct((S, 3), jnp.float32),
        grid=(NT,),
        in_specs=in_specs,
        # Tiny (S, 3) partial-sum array resident in SMEM across the grid.
        out_specs=pl.BlockSpec(memory_space=pltpu.MemorySpace.SMEM),
        scratch_shapes=[pltpu.VMEM((S, B, C, 1), jnp.float32)],
        compiler_params=pltpu.CompilerParams(
            # The time axis carries the temporal-delta scratch -> sequential.
            dimension_semantics=("arbitrary",)),
        cost_estimate=cost,
    )(tgt_b1t, *preds)


def combined_loss(predictions, targets, *, num_classes, lambda1=1.0,
                  lambda2=0.15, tau=4.0, time_tile=TIME_TILE):
    """predictions: list of (B, C, T) stage outputs; targets: (B, T) int."""
    B, C, T = predictions[0].shape
    assert C == num_classes
    for p in predictions:
        assert p.shape == (B, C, T)
    # TODO(synk): the PyTorch module truncates to min(len(logits), len(targets));
    # here all heads and the targets are assumed to share the same T.
    assert targets.shape == (B, T)
    tgt = targets.astype(jnp.int32).reshape(B, 1, T)

    compute_tmse = T > 1
    sums = _per_stage_sums(tuple(predictions), tgt, tau=tau,
                           compute_tmse=compute_tmse, time_tile=time_tile)
    ce = sums[:, 0] / sums[:, 1]                 # mean CE over valid tokens
    total = lambda1 * jnp.sum(ce)
    if compute_tmse:
        tmse = sums[:, 2] / jnp.float32(B * C * (T - 1))
        total = total + lambda2 * jnp.sum(tmse)
    return total


def reference_loss(predictions, targets, *, num_classes, lambda1=1.0,
                   lambda2=0.15, tau=4.0):
    """Pure-JAX reference matching the PyTorch forward."""
    total = 0.0
    for p in predictions:
        B, C, T = p.shape
        logits = jnp.transpose(p, (0, 2, 1)).reshape(-1, C).astype(jnp.float32)
        tgt = targets.reshape(-1)
        m = jnp.max(logits, axis=-1)
        lse = m + jnp.log(jnp.sum(jnp.exp(logits - m[:, None]), axis=-1))
        picked = jnp.take_along_axis(
            logits, jnp.clip(tgt, 0, C - 1)[:, None], axis=-1)[:, 0]
        valid = tgt != IGNORE_INDEX
        ce = (jnp.sum(jnp.where(valid, lse - picked, 0.0))
              / jnp.sum(valid.astype(jnp.float32)))
        if T > 1:
            x = p.astype(jnp.float32)
            mm = jnp.max(x, axis=1, keepdims=True)
            ee = jnp.exp(x - mm)
            probs = ee / jnp.sum(ee, axis=1, keepdims=True)
            lp = jnp.log(jnp.maximum(probs, 1e-8))
            d = jnp.abs(lp[:, :, 1:] - lp[:, :, :-1])
            tm = jnp.mean(jnp.minimum(d * d, tau * tau))
        else:
            tm = 0.0
        total = total + lambda1 * ce + lambda2 * tm
    return total


if __name__ == "__main__":
    key = jax.random.PRNGKey(0)

    def run_case(B, C, T, S, case_key, time_tile=TIME_TILE):
        ks = jax.random.split(case_key, S + 1)
        preds = [jax.random.normal(ks[i], (B, C, T), dtype=jnp.float32)
                 for i in range(S)]
        tgt = jax.random.randint(ks[S], (B, T), 0, C).astype(jnp.int32)
        # exercise ignore_index
        tgt = tgt.at[0, min(3, T - 1)].set(IGNORE_INDEX)
        if B > 1 and T > 7:
            tgt = tgt.at[1, 7].set(IGNORE_INDEX)
        loss = jax.block_until_ready(
            combined_loss(preds, tgt, num_classes=C, lambda1=1.0,
                          lambda2=0.15, tau=4.0, time_tile=time_tile))
        ref = reference_loss(preds, tgt, num_classes=C,
                             lambda1=1.0, lambda2=0.15, tau=4.0)
        np.testing.assert_allclose(np.asarray(loss), np.asarray(ref),
                                   rtol=1e-4, atol=1e-4)

    k1, k2, k3 = jax.random.split(key, 3)
    run_case(B=2, C=6, T=16, S=2, case_key=k1)                  # single tile, slice path
    run_case(B=2, C=6, T=1, S=2, case_key=k2)                   # no temporal term
    run_case(B=2, C=6, T=600, S=3, case_key=k3, time_tile=256)  # multi-tile: roll path,
                                                                # carry seam, partial last tile
    print("KERNEL_OK")
</pallas_src>

<mosaic_0001>
module attributes {stable_mosaic.version = 11 : i64} {
  func.func @_combined_loss_kernel(%arg0: i32, %arg1: memref<2x1x16xi32, #tpu.memory_space<vmem>>, %arg2: memref<2x6x16xf32, #tpu.memory_space<vmem>>, %arg3: memref<2x6x16xf32, #tpu.memory_space<vmem>>, %arg4: memref<2x3xf32, #tpu.memory_space<smem>>, %arg5: memref<2x2x6x1xf32, #tpu.memory_space<vmem>>) attributes {dimension_semantics = [#tpu.dimension_semantics<arbitrary>], iteration_bounds = array<i64: 1>, scalar_prefetch = 0 : i64, scratch_operands = 1 : i64, tpu.core_type = #tpu.core_type<tc>, window_params = [{transform_indices = @transform_0, window_bounds = array<i64: 2, 1, 16>}, {transform_indices = @transform_1, window_bounds = array<i64: 2, 6, 16>}, {transform_indices = @transform_2, window_bounds = array<i64: 2, 6, 16>}, {transform_indices = @transform_3, window_bounds = array<i64: 2, 3>}]} {
    %c16_i32 = arith.constant 16 : i32
    %0 = arith.muli %arg0, %c16_i32 : i32
    %c0_i32 = arith.constant 0 : i32
    %1 = arith.cmpi eq, %arg0, %c0_i32 : i32
    %2 = arith.extui %1 : i1 to i32
    %c0_i32_0 = arith.constant 0 : i32
    %3 = arith.cmpi ne, %2, %c0_i32_0 : i32
    scf.if %3 {
      %cst_81 = arith.constant 0.000000e+00 : f32
      %c0_82 = arith.constant 0 : index
      %c0_83 = arith.constant 0 : index
      %169 = memref.load %arg4[%c0_82, %c0_83] : memref<2x3xf32, #tpu.memory_space<smem>>
      memref.store %cst_81, %arg4[%c0_82, %c0_83] : memref<2x3xf32, #tpu.memory_space<smem>>
      %cst_84 = arith.constant 0.000000e+00 : f32
      %c0_85 = arith.constant 0 : index
      %c1_86 = arith.constant 1 : index
      %170 = memref.load %arg4[%c0_85, %c1_86] : memref<2x3xf32, #tpu.memory_space<smem>>
      memref.store %cst_84, %arg4[%c0_85, %c1_86] : memref<2x3xf32, #tpu.memory_space<smem>>
      %cst_87 = arith.constant 0.000000e+00 : f32
      %c0_88 = arith.constant 0 : index
      %c2_89 = arith.constant 2 : index
      %171 = memref.load %arg4[%c0_88, %c2_89] : memref<2x3xf32, #tpu.memory_space<smem>>
      memref.store %cst_87, %arg4[%c0_88, %c2_89] : memref<2x3xf32, #tpu.memory_space<smem>>
      %cst_90 = arith.constant 0.000000e+00 : f32
      %c1_91 = arith.constant 1 : index
      %c0_92 = arith.constant 0 : index
      %172 = memref.load %arg4[%c1_91, %c0_92] : memref<2x3xf32, #tpu.memory_space<smem>>
      memref.store %cst_90, %arg4[%c1_91, %c0_92] : memref<2x3xf32, #tpu.memory_space<smem>>
      %cst_93 = arith.constant 0.000000e+00 : f32
      %c1_94 = arith.constant 1 : index
      %c1_95 = arith.constant 1 : index
      %173 = memref.load %arg4[%c1_94, %c1_95] : memref<2x3xf32, #tpu.memory_space<smem>>
      memref.store %cst_93, %arg4[%c1_94, %c1_95] : memref<2x3xf32, #tpu.memory_space<smem>>
      %cst_96 = arith.constant 0.000000e+00 : f32
      %c1_97 = arith.constant 1 : index
      %c2_98 = arith.constant 2 : index
      %174 = memref.load %arg4[%c1_97, %c2_98] : memref<2x3xf32, #tpu.memory_space<smem>>
      memref.store %cst_96, %arg4[%c1_97, %c2_98] : memref<2x3xf32, #tpu.memory_space<smem>>
      %cst_99 = arith.constant 0.000000e+00 : f32
      %175 = vector.broadcast %cst_99 : f32 to vector<2x2x6x1xf32>
      %c0_100 = arith.constant 0 : index
      %c0_101 = arith.constant 0 : index
      %c0_102 = arith.constant 0 : index
      %c0_103 = arith.constant 0 : index
      %176 = vector.load %arg5[%c0_100, %c0_101, %c0_102, %c0_103] : memref<2x2x6x1xf32, #tpu.memory_space<vmem>>, vector<2x2x6x1xf32>
      tpu.vector_store %arg5[%c0_100, %c0_101, %c0_102, %c0_103], %175 {strides = array<i32>} : memref<2x2x6x1xf32, #tpu.memory_space<vmem>>, vector<2x2x6x1xf32>,
    } else {
    }
    %4 = tpu.iota {dimensions = array<i32: 2>} : vector<1x1x16xi32>
    %5 = vector.broadcast %0 : i32 to vector<1x1x16xi32>
    %6 = arith.addi %5, %4 : vector<1x1x16xi32>
    %c16_i32_1 = arith.constant 16 : i32
    %7 = vector.broadcast %c16_i32_1 : i32 to vector<1x1x16xi32>
    %8 = arith.cmpi slt, %6, %7 : vector<1x1x16xi32>
    %9 = tpu.iota {dimensions = array<i32: 1>} : vector<1x6x1xi32>
    %c0 = arith.constant 0 : index
    %c0_2 = arith.constant 0 : index
    %c0_3 = arith.constant 0 : index
    %10 = vector.load %arg1[%c0, %c0_2, %c0_3] : memref<2x1x16xi32, #tpu.memory_space<vmem>>, vector<2x1x16xi32>
    %c-100_i32 = arith.constant -100 : i32
    %11 = vector.broadcast %c-100_i32 : i32 to vector<2x1x16xi32>
    %12 = arith.cmpi ne, %10, %11 : vector<2x1x16xi32>
    %13 = vector.broadcast %8 : vector<1x1x16xi1> to vector<2x1x16xi1>
    %14 = arith.andi %12, %13 : vector<2x1x16xi1>
    %15 = arith.extui %14 : vector<2x1x16xi1> to vector<2x1x16xi32>
    %16 = arith.sitofp %15 : vector<2x1x16xi32> to vector<2x1x16xf32>
    %17 = vector.shape_cast %16 : vector<2x1x16xf32> to vector<1x2x1x16xf32>
    %cst = arith.constant dense<0.000000e+00> : vector<1xf32>
    %18 = vector.multi_reduction <add>, %17, %cst [1, 2, 3] : vector<1x2x1x16xf32> to vector<1xf32>
    %19 = vector.shape_cast %18 : vector<1xf32> to vector<1x1x1x1xf32>
    %20 = vector.extract %19[0, 0, 0, 0] : f32 from vector<1x1x1x1xf32>
    %c0_4 = arith.constant 0 : index
    %c0_5 = arith.constant 0 : index
    %c0_6 = arith.constant 0 : index
    %21 = vector.load %arg2[%c0_4, %c0_5, %c0_6] : memref<2x6x16xf32, #tpu.memory_space<vmem>>, vector<2x6x16xf32>
    %cst_7 = arith.constant dense<0xFF800000> : vector<2x16xf32>
    %22 = vector.multi_reduction <maximumf>, %21, %cst_7 [1] : vector<2x6x16xf32> to vector<2x16xf32>
    %23 = vector.shape_cast %22 : vector<2x16xf32> to vector<2x1x16xf32>
    %24 = vector.broadcast %23 : vector<2x1x16xf32> to vector<2x6x16xf32>
    %25 = arith.subf %21, %24 : vector<2x6x16xf32>
    %26 = math.exp %25 : vector<2x6x16xf32>
    %cst_8 = arith.constant dense<0.000000e+00> : vector<2x16xf32>
    %27 = vector.multi_reduction <add>, %26, %cst_8 [1] : vector<2x6x16xf32> to vector<2x16xf32>
    %28 = vector.shape_cast %27 : vector<2x16xf32> to vector<2x1x16xf32>
    %29 = math.log %28 : vector<2x1x16xf32>
    %30 = arith.addf %23, %29 : vector<2x1x16xf32>
    %31 = vector.broadcast %30 : vector<2x1x16xf32> to vector<2x6x16xf32>
    %32 = arith.subf %21, %31 : vector<2x6x16xf32>
    %33 = vector.broadcast %9 : vector<1x6x1xi32> to vector<2x6x16xi32>
    %34 = vector.broadcast %10 : vector<2x1x16xi32> to vector<2x6x16xi32>
    %35 = arith.cmpi eq, %33, %34 : vector<2x6x16xi32>
    %cst_9 = arith.constant 0.000000e+00 : f32
    %36 = vector.broadcast %cst_9 : f32 to vector<2x6x16xf32>
    %37 = arith.select %35, %32, %36 : vector<2x6x16xi1>, vector<2x6x16xf32>
    %cst_10 = arith.constant dense<0.000000e+00> : vector<2x16xf32>
    %38 = vector.multi_reduction <add>, %37, %cst_10 [1] : vector<2x6x16xf32> to vector<2x16xf32>
    %39 = vector.shape_cast %38 : vector<2x16xf32> to vector<2x1x16xf32>
    %cst_11 = arith.constant 0.000000e+00 : f32
    %40 = vector.broadcast %cst_11 : f32 to vector<2x1x16xf32>
    %41 = arith.select %14, %39, %40 : vector<2x1x16xi1>, vector<2x1x16xf32>
    %42 = vector.shape_cast %41 : vector<2x1x16xf32> to vector<1x2x1x16xf32>
    %cst_12 = arith.constant dense<0.000000e+00> : vector<1xf32>
    %43 = vector.multi_reduction <add>, %42, %cst_12 [1, 2, 3] : vector<1x2x1x16xf32> to vector<1xf32>
    %44 = vector.shape_cast %43 : vector<1xf32> to vector<1x1x1x1xf32>
    %45 = vector.extract %44[0, 0, 0, 0] : f32 from vector<1x1x1x1xf32>
    %cst_13 = arith.constant 0.000000e+00 : f32
    %46 = arith.subf %cst_13, %45 : f32
    %c0_14 = arith.constant 0 : index
    %c0_15 = arith.constant 0 : index
    %47 = memref.load %arg4[%c0_14, %c0_15] : memref<2x3xf32, #tpu.memory_space<smem>>
    %48 = arith.addf %47, %46 : f32
    %c0_16 = arith.constant 0 : index
    %c0_17 = arith.constant 0 : index
    %49 = memref.load %arg4[%c0_16, %c0_17] : memref<2x3xf32, #tpu.memory_space<smem>>
    memref.store %48, %arg4[%c0_16, %c0_17] : memref<2x3xf32, #tpu.memory_space<smem>>
    %c0_18 = arith.constant 0 : index
    %c1 = arith.constant 1 : index
    %50 = memref.load %arg4[%c0_18, %c1] : memref<2x3xf32, #tpu.memory_space<smem>>
    %51 = arith.addf %50, %20 : f32
    %c0_19 = arith.constant 0 : index
    %c1_20 = arith.constant 1 : index
    %52 = memref.load %arg4[%c0_19, %c1_20] : memref<2x3xf32, #tpu.memory_space<smem>>
    memref.store %51, %arg4[%c0_19, %c1_20] : memref<2x3xf32, #tpu.memory_space<smem>>
    %cst_21 = arith.constant -18.420681 : f32
    %53 = vector.broadcast %cst_21 : f32 to vector<2x6x16xf32>
    %54 = arith.maximumf %32, %53 : vector<2x6x16xf32>
    %55 = vector.extract_strided_slice %54 {offsets = [0, 0, 1], sizes = [2, 6, 15], strides = [1, 1, 1]} : vector<2x6x16xf32> to vector<2x6x15xf32>
    %56 = vector.extract_strided_slice %54 {offsets = [0, 0, 0], sizes = [2, 6, 15], strides = [1, 1, 1]} : vector<2x6x16xf32> to vector<2x6x15xf32>
    %57 = arith.subf %55, %56 : vector<2x6x15xf32>
    %58 = arith.mulf %57, %57 : vector<2x6x15xf32>
    %cst_22 = arith.constant 1.600000e+01 : f32
    %59 = vector.broadcast %cst_22 : f32 to vector<2x6x15xf32>
    %60 = arith.minimumf %58, %59 : vector<2x6x15xf32>
    %61 = vector.extract_strided_slice %6 {offsets = [0, 0, 1], sizes = [1, 1, 15], strides = [1, 1, 1]} : vector<1x1x16xi32> to vector<1x1x15xi32>
    %c16_i32_23 = arith.constant 16 : i32
    %62 = vector.broadcast %c16_i32_23 : i32 to vector<1x1x15xi32>
    %63 = arith.cmpi slt, %61, %62 : vector<1x1x15xi32>
    %cst_24 = arith.constant 0.000000e+00 : f32
    %64 = vector.shape_cast %63 : vector<1x1x15xi1> to vector<1x1x15xi1>
    %65 = vector.broadcast %64 : vector<1x1x15xi1> to vector<2x6x15xi1>
    %66 = vector.broadcast %cst_24 : f32 to vector<2x6x15xf32>
    %67 = arith.select %65, %60, %66 : vector<2x6x15xi1>, vector<2x6x15xf32>
    %68 = vector.shape_cast %67 : vector<2x6x15xf32> to vector<1x2x6x15xf32>
    %cst_25 = arith.constant dense<0.000000e+00> : vector<1xf32>
    %69 = vector.multi_reduction <add>, %68, %cst_25 [1, 2, 3] : vector<1x2x6x15xf32> to vector<1xf32>
    %70 = vector.shape_cast %69 : vector<1xf32> to vector<1x1x1x1xf32>
    %71 = vector.extract %70[0, 0, 0, 0] : f32 from vector<1x1x1x1xf32>
    %72 = vector.extract_strided_slice %54 {offsets = [0, 0, 0], sizes = [2, 6, 1], strides = [1, 1, 1]} : vector<2x6x16xf32> to vector<2x6x1xf32>
    %c0_26 = arith.constant 0 : index
    %c0_27 = arith.constant 0 : index
    %c0_28 = arith.constant 0 : index
    %c0_29 = arith.constant 0 : index
    %73 = vector.load %arg5[%c0_26, %c0_27, %c0_28, %c0_29] : memref<2x2x6x1xf32, #tpu.memory_space<vmem>>, vector<1x2x6x1xf32>
    %74 = vector.shape_cast %73 : vector<1x2x6x1xf32> to vector<2x6x1xf32>
    %75 = arith.subf %72, %74 : vector<2x6x1xf32>
    %76 = arith.mulf %75, %75 : vector<2x6x1xf32>
    %cst_30 = arith.constant 1.600000e+01 : f32
    %77 = vector.broadcast %cst_30 : f32 to vector<2x6x1xf32>
    %78 = arith.minimumf %76, %77 : vector<2x6x1xf32>
    %c1_i32 = arith.constant 1 : i32
    %79 = arith.cmpi sge, %0, %c1_i32 : i32
    %c16_i32_31 = arith.constant 16 : i32
    %80 = arith.cmpi slt, %0, %c16_i32_31 : i32
    %81 = arith.andi %79, %80 : i1
    %82 = vector.shape_cast %78 : vector<2x6x1xf32> to vector<1x2x6x1xf32>
    %cst_32 = arith.constant dense<0.000000e+00> : vector<1xf32>
    %83 = vector.multi_reduction <add>, %82, %cst_32 [1, 2, 3] : vector<1x2x6x1xf32> to vector<1xf32>
    %84 = vector.shape_cast %83 : vector<1xf32> to vector<1x1x1x1xf32>
    %85 = vector.extract %84[0, 0, 0, 0] : f32 from vector<1x1x1x1xf32>
    %cst_33 = arith.constant 0.000000e+00 : f32
    %86 = arith.select %81, %85, %cst_33 : f32
    %87 = arith.addf %71, %86 : f32
    %c0_34 = arith.constant 0 : index
    %c2 = arith.constant 2 : index
    %88 = memref.load %arg4[%c0_34, %c2] : memref<2x3xf32, #tpu.memory_space<smem>>
    %89 = arith.addf %88, %87 : f32
    %c0_35 = arith.constant 0 : index
    %c2_36 = arith.constant 2 : index
    %90 = memref.load %arg4[%c0_35, %c2_36] : memref<2x3xf32, #tpu.memory_space<smem>>
    memref.store %89, %arg4[%c0_35, %c2_36] : memref<2x3xf32, #tpu.memory_space<smem>>
    %91 = vector.extract_strided_slice %54 {offsets = [0, 0, 15], sizes = [2, 6, 1], strides = [1, 1, 1]} : vector<2x6x16xf32> to vector<2x6x1xf32>
    %c0_37 = arith.constant 0 : index
    %c0_38 = arith.constant 0 : index
    %c0_39 = arith.constant 0 : index
    %c0_40 = arith.constant 0 : index
    %92 = vector.load %arg5[%c0_37, %c0_38, %c0_39, %c0_40] : memref<2x2x6x1xf32, #tpu.memory_space<vmem>>, vector<1x2x6x1xf32>
    %93 = vector.shape_cast %92 : vector<1x2x6x1xf32> to vector<2x6x1xf32>
    %94 = vector.shape_cast %91 : vector<2x6x1xf32> to vector<1x2x6x1xf32>
    tpu.vector_store %arg5[%c0_37, %c0_38, %c0_39, %c0_40], %94 {strides = array<i32>} : memref<2x2x6x1xf32, #tpu.memory_space<vmem>>, vector<1x2x6x1xf32>,
    %c0_41 = arith.constant 0 : index
    %c0_42 = arith.constant 0 : index
    %c0_43 = arith.constant 0 : index
    %95 = vector.load %arg3[%c0_41, %c0_42, %c0_43] : memref<2x6x16xf32, #tpu.memory_space<vmem>>, vector<2x6x16xf32>
    %cst_44 = arith.constant dense<0xFF800000> : vector<2x16xf32>
    %96 = vector.multi_reduction <maximumf>, %95, %cst_44 [1] : vector<2x6x16xf32> to vector<2x16xf32>
    %97 = vector.shape_cast %96 : vector<2x16xf32> to vector<2x1x16xf32>
    %98 = vector.broadcast %97 : vector<2x1x16xf32> to vector<2x6x16xf32>
    %99 = arith.subf %95, %98 : vector<2x6x16xf32>
    %100 = math.exp %99 : vector<2x6x16xf32>
    %cst_45 = arith.constant dense<0.000000e+00> : vector<2x16xf32>
    %101 = vector.multi_reduction <add>, %100, %cst_45 [1] : vector<2x6x16xf32> to vector<2x16xf32>
    %102 = vector.shape_cast %101 : vector<2x16xf32> to vector<2x1x16xf32>
    %103 = math.log %102 : vector<2x1x16xf32>
    %104 = arith.addf %97, %103 : vector<2x1x16xf32>
    %105 = vector.broadcast %104 : vector<2x1x16xf32> to vector<2x6x16xf32>
    %106 = arith.subf %95, %105 : vector<2x6x16xf32>
    %107 = vector.broadcast %9 : vector<1x6x1xi32> to vector<2x6x16xi32>
    %108 = vector.broadcast %10 : vector<2x1x16xi32> to vector<2x6x16xi32>
    %109 = arith.cmpi eq, %107, %108 : vector<2x6x16xi32>
    %cst_46 = arith.constant 0.000000e+00 : f32
    %110 = vector.broadcast %cst_46 : f32 to vector<2x6x16xf32>
    %111 = arith.select %109, %106, %110 : vector<2x6x16xi1>, vector<2x6x16xf32>
    %cst_47 = arith.constant dense<0.000000e+00> : vector<2x16xf32>
    %112 = vector.multi_reduction <add>, %111, %cst_47 [1] : vector<2x6x16xf32> to vector<2x16xf32>
    %113 = vector.shape_cast %112 : vector<2x16xf32> to vector<2x1x16xf32>
    %cst_48 = arith.constant 0.000000e+00 : f32
    %114 = vector.broadcast %cst_48 : f32 to vector<2x1x16xf32>
    %115 = arith.select %14, %113, %114 : vector<2x1x16xi1>, vector<2x1x16xf32>
    %116 = vector.shape_cast %115 : vector<2x1x16xf32> to vector<1x2x1x16xf32>
    %cst_49 = arith.constant dense<0.000000e+00> : vector<1xf32>
    %117 = vector.multi_reduction <add>, %116, %cst_49 [1, 2, 3] : vector<1x2x1x16xf32> to vector<1xf32>
    %118 = vector.shape_cast %117 : vector<1xf32> to vector<1x1x1x1xf32>
    %119 = vector.extract %118[0, 0, 0, 0] : f32 from vector<1x1x1x1xf32>
    %cst_50 = arith.constant 0.000000e+00 : f32
    %120 = arith.subf %cst_50, %119 : f32
    %c1_51 = arith.constant 1 : index
    %c0_52 = arith.constant 0 : index
    %121 = memref.load %arg4[%c1_51, %c0_52] : memref<2x3xf32, #tpu.memory_space<smem>>
    %122 = arith.addf %121, %120 : f32
    %c1_53 = arith.constant 1 : index
    %c0_54 = arith.constant 0 : index
    %123 = memref.load %arg4[%c1_53, %c0_54] : memref<2x3xf32, #tpu.memory_space<smem>>
    memref.store %122, %arg4[%c1_53, %c0_54] : memref<2x3xf32, #tpu.memory_space<smem>>
    %c1_55 = arith.constant 1 : index
    %c1_56 = arith.constant 1 : index
    %124 = memref.load %arg4[%c1_55, %c1_56] : memref<2x3xf32, #tpu.memory_space<smem>>
    %125 = arith.addf %124, %20 : f32
    %c1_57 = arith.constant 1 : index
    %c1_58 = arith.constant 1 : index
    %126 = memref.load %arg4[%c1_57, %c1_58] : memref<2x3xf32, #tpu.memory_space<smem>>
    memref.store %125, %arg4[%c1_57, %c1_58] : memref<2x3xf32, #tpu.memory_space<smem>>
    %cst_59 = arith.constant -18.420681 : f32
    %127 = vector.broadcast %cst_59 : f32 to vector<2x6x16xf32>
    %128 = arith.maximumf %106, %127 : vector<2x6x16xf32>
    %129 = vector.extract_strided_slice %128 {offsets = [0, 0, 1], sizes = [2, 6, 15], strides = [1, 1, 1]} : vector<2x6x16xf32> to vector<2x6x15xf32>
    %130 = vector.extract_strided_slice %128 {offsets = [0, 0, 0], sizes = [2, 6, 15], strides = [1, 1, 1]} : vector<2x6x16xf32> to vector<2x6x15xf32>
    %131 = arith.subf %129, %130 : vector<2x6x15xf32>
    %132 = arith.mulf %131, %131 : vector<2x6x15xf32>
    %cst_60 = arith.constant 1.600000e+01 : f32
    %133 = vector.broadcast %cst_60 : f32 to vector<2x6x15xf32>
    %134 = arith.minimumf %132, %133 : vector<2x6x15xf32>
    %135 = vector.extract_strided_slice %6 {offsets = [0, 0, 1], sizes = [1, 1, 15], strides = [1, 1, 1]} : vector<1x1x16xi32> to vector<1x1x15xi32>
    %c16_i32_61 = arith.constant 16 : i32
    %136 = vector.broadcast %c16_i32_61 : i32 to vector<1x1x15xi32>
    %137 = arith.cmpi slt, %135, %136 : vector<1x1x15xi32>
    %cst_62 = arith.constant 0.000000e+00 : f32
    %138 = vector.shape_cast %137 : vector<1x1x15xi1> to vector<1x1x15xi1>
    %139 = vector.broadcast %138 : vector<1x1x15xi1> to vector<2x6x15xi1>
    %140 = vector.broadcast %cst_62 : f32 to vector<2x6x15xf32>
    %141 = arith.select %139, %134, %140 : vector<2x6x15xi1>, vector<2x6x15xf32>
    %142 = vector.shape_cast %141 : vector<2x6x15xf32> to vector<1x2x6x15xf32>
    %cst_63 = arith.constant dense<0.000000e+00> : vector<1xf32>
    %143 = vector.multi_reduction <add>, %142, %cst_63 [1, 2, 3] : vector<1x2x6x15xf32> to vector<1xf32>
    %144 = vector.shape_cast %143 : vector<1xf32> to vector<1x1x1x1xf32>
    %145 = vector.extract %144[0, 0, 0, 0] : f32 from vector<1x1x1x1xf32>
    %146 = vector.extract_strided_slice %128 {offsets = [0, 0, 0], sizes = [2, 6, 1], strides = [1, 1, 1]} : vector<2x6x16xf32> to vector<2x6x1xf32>
    %c1_64 = arith.constant 1 : index
    %c0_65 = arith.constant 0 : index
    %c0_66 = arith.constant 0 : index
    %c0_67 = arith.constant 0 : index
    %147 = vector.load %arg5[%c1_64, %c0_65, %c0_66, %c0_67] : memref<2x2x6x1xf32, #tpu.memory_space<vmem>>, vector<1x2x6x1xf32>
    %148 = vector.shape_cast %147 : vector<1x2x6x1xf32> to vector<2x6x1xf32>
    %149 = arith.subf %146, %148 : vector<2x6x1xf32>
    %150 = arith.mulf %149, %149 : vector<2x6x1xf32>
    %cst_68 = arith.constant 1.600000e+01 : f32
    %151 = vector.broadcast %cst_68 : f32 to vector<2x6x1xf32>
    %152 = arith.minimumf %150, %151 : vector<2x6x1xf32>
    %c1_i32_69 = arith.constant 1 : i32
    %153 = arith.cmpi sge, %0, %c1_i32_69 : i32
    %c16_i32_70 = arith.constant 16 : i32
    %154 = arith.cmpi slt, %0, %c16_i32_70 : i32
    %155 = arith.andi %153, %154 : i1
    %156 = vector.shape_cast %152 : vector<2x6x1xf32> to vector<1x2x6x1xf32>
    %cst_71 = arith.constant dense<0.000000e+00> : vector<1xf32>
    %157 = vector.multi_reduction <add>, %156, %cst_71 [1, 2, 3] : vector<1x2x6x1xf32> to vector<1xf32>
    %158 = vector.shape_cast %157 : vector<1xf32> to vector<1x1x1x1xf32>
    %159 = vector.extract %158[0, 0, 0, 0] : f32 from vector<1x1x1x1xf32>
    %cst_72 = arith.constant 0.000000e+00 : f32
    %160 = arith.select %155, %159, %cst_72 : f32
    %161 = arith.addf %145, %160 : f32
    %c1_73 = arith.constant 1 : index
    %c2_74 = arith.constant 2 : index
    %162 = memref.load %arg4[%c1_73, %c2_74] : memref<2x3xf32, #tpu.memory_space<smem>>
    %163 = arith.addf %162, %161 : f32
    %c1_75 = arith.constant 1 : index
    %c2_76 = arith.constant 2 : index
    %164 = memref.load %arg4[%c1_75, %c2_76] : memref<2x3xf32, #tpu.memory_space<smem>>
    memref.store %163, %arg4[%c1_75, %c2_76] : memref<2x3xf32, #tpu.memory_space<smem>>
    %165 = vector.extract_strided_slice %128 {offsets = [0, 0, 15], sizes = [2, 6, 1], strides = [1, 1, 1]} : vector<2x6x16xf32> to vector<2x6x1xf32>
    %c1_77 = arith.constant 1 : index
    %c0_78 = arith.constant 0 : index
    %c0_79 = arith.constant 0 : index
    %c0_80 = arith.constant 0 : index
    %166 = vector.load %arg5[%c1_77, %c0_78, %c0_79, %c0_80] : memref<2x2x6x1xf32, #tpu.memory_space<vmem>>, vector<1x2x6x1xf32>
    %167 = vector.shape_cast %166 : vector<1x2x6x1xf32> to vector<2x6x1xf32>
    %168 = vector.shape_cast %165 : vector<2x6x1xf32> to vector<1x2x6x1xf32>
    tpu.vector_store %arg5[%c1_77, %c0_78, %c0_79, %c0_80], %168 {strides = array<i32>} : memref<2x2x6x1xf32, #tpu.memory_space<vmem>>, vector<1x2x6x1xf32>,
    return
  }
  func.func @transform_0(%arg0: i32) -> (i32, i32, i32) {
    %c0_i32 = arith.constant 0 : i32
    %c0_i32_0 = arith.constant 0 : i32
    %c0_i32_1 = arith.constant 0 : i32
    return %c0_i32, %c0_i32_0, %arg0 : i32, i32, i32
  }
  func.func @transform_1(%arg0: i32) -> (i32, i32, i32) {
    %c0_i32 = arith.constant 0 : i32
    %c0_i32_0 = arith.constant 0 : i32
    %c0_i32_1 = arith.constant 0 : i32
    return %c0_i32, %c0_i32_0, %arg0 : i32, i32, i32
  }
  func.func @transform_2(%arg0: i32) -> (i32, i32, i32) {
    %c0_i32 = arith.constant 0 : i32
    %c0_i32_0 = arith.constant 0 : i32
    %c0_i32_1 = arith.constant 0 : i32
    return %c0_i32, %c0_i32_0, %arg0 : i32, i32, i32
  }
  func.func @transform_3(%arg0: i32) -> (i32, i32) {
    %c0_i32 = arith.constant 0 : i32
    %c0_i32_0 = arith.constant 0 : i32
    %c0_i32_1 = arith.constant 0 : i32
    return %c0_i32, %c0_i32_0 : i32, i32
  }
}

</mosaic_0001>

<llo_original>
// kernel: tpu_custom_call.1
$region0: #{tpu_custom_call.1}
  #allocation0 [shape = 'u32[]', space=smem, size = 0x4, offset = 0x4, fixed_abs, tag = 'smem constant byte address 0x4 - core index']
  #allocation1 [shape = 'u32[72,128]{1,0:T(1,128)}', space=vmem, size = 0x9000, scoped, tag = 'internal scratch']
  #allocation2 [shape = 'f32[2,2,6,1]{3,2,1,0:T(8,128)}', space=vmem, size = 0x4000, scoped, tag = 'scratch operand']
  %s0 = inlined_call_operand.vmem [shape: s32[2,1,16], index: 0, kind: input, shape index: {}]
  %s1 = inlined_call_operand.vmem [shape: f32[2,6,16], index: 1, kind: input, shape index: {}]
  %s2 = inlined_call_operand.vmem [shape: f32[2,6,16], index: 2, kind: input, shape index: {}]
  %s3 = inlined_call_operand.hbm [shape: f32[2,3], index: 3, kind: output, shape index: {}]
  %s4 = sld [smem:[#allocation0]]
  $region26: #{tpu_custom_call.1} parent=0
    _
  %s6 = ssub.s32 1, %s4
  %s7 = scalar_select 0, %s6, %s4
  $region1: #{tpu_custom_call.1} parent=0
    #allocation3 [shape = 'u8[1024]{0}', space=smem, size = 0x400, scoped, tag = 'output window, operand 0, single buffered']
    #allocation4 [shape = 's32[1]{0}', space=sflag, size = 0x4, scoped, tag = 'scoped memory for tpu_custom_call.1']
    %8 = vsyncpa [#allocation4], 0
    // Predicated region
    $region2: #{tpu_custom_call.1} parent=1 // pred_check
      _
    $region3: #{tpu_custom_call.1} parent=1 // pred_check_branch
      %10 = sbr.rel (0) target = $region5
    $region4: #{tpu_custom_call.1} parent=1 // pred_region
      _
    $region5: #{tpu_custom_call.1} parent=1 // pred_fallthru
      _
    // Predicated region
    $region6: #{tpu_custom_call.1} parent=1 // pred_check
      _
    $region7: #{tpu_custom_call.1} parent=1 // pred_check_branch
      %12 = sbr.rel (0) target = $region9
    $region8: #{tpu_custom_call.1} parent=1 // pred_region
      _
    $region9: #{tpu_custom_call.1} parent=1 // pred_fallthru
      _
    // Predicated region
    $region10: #{tpu_custom_call.1} parent=1 // pred_check
      _
    $region11: #{tpu_custom_call.1} parent=1 // pred_check_branch
      %14 = sbr.rel (0) target = $region13
    $region12: #{tpu_custom_call.1} parent=1 // pred_region
      _
    $region13: #{tpu_custom_call.1} parent=1 // pred_fallthru
      _
    %s15 = smul.u32 0, 16
    %p16 = scmp.eq.s32.totalorder 0, 0
    // Predicated region
    $region14: #{tpu_custom_call.1} parent=1 // pred_check
      %p17 = pneg %p16
    $region15: #{tpu_custom_call.1} parent=1 // pred_check_branch
      %19 = sbr.rel (%p17) target = $region17
    $region16: #{tpu_custom_call.1} parent=1 // pred_region
      %s20 = scalar_lea.smem [#allocation3], 0
      %21 = sst [smem:[%s20]] 0.0
      %s22 = scalar_lea.smem [#allocation3], 1
      %23 = sst [smem:[%s22]] 0.0
      %s24 = scalar_lea.smem [#allocation3], 2
      %25 = sst [smem:[%s24]] 0.0
      %s26 = scalar_lea.smem [#allocation3], 128
      %27 = sst [smem:[%s26]] 0.0
      %s28 = scalar_lea.smem [#allocation3], 129
      %29 = sst [smem:[%s28]] 0.0
      %s30 = scalar_lea.smem [#allocation3], 130
      %31 = sst [smem:[%s30]] 0.0
      %vm32 = vcmask 5120
      %33 = vst.msk [vmem:[#allocation2] sm:$0x3f] %vm32, 0.0
      %34 = vst.msk [vmem:[#allocation2 + $0x8] sm:$0x3f] %vm32, 0.0
      %35 = vst.msk [vmem:[#allocation2 + $0x10] sm:$0x3f] %vm32, 0.0
      %36 = vst.msk [vmem:[#allocation2 + $0x18] sm:$0x3f] %vm32, 0.0
    $region17: #{tpu_custom_call.1} parent=1 // pred_fallthru
      _
    %v37 = vlaneseq
    %v38 = vand.u32 %v37, 127
    %v39 = vstv %s15
    %v40 = vadd.s32 %v39, %v38
    %vm41 = vcmp.lt.s32.totalorder %v40, 16
    %v42 = vlaneseq
    %v43 = vshrl.u32 %v42, 7
    %v44 = vld [vmem:[%s0] sm:$0x1]
    %v45 = vld [vmem:[%s0 + $0x1] sm:$0x1]
    %vm46 = vcmp.ne.s32.totalorder %v44, 4294967196
    %vm47 = vcmp.ne.s32.totalorder %v45, 4294967196
    %v48 = vsel %vm41, 1, 0
    %vm49 = vcmp.eq.s32.totalorder %v48, 1
    %vm50 = vmand %vm46, %vm49
    %vm51 = vmand %vm47, %vm49
    %v52 = vsel %vm50, 1, 0
    %v53 = vsel %vm51, 1, 0
    %v54 = vcvt.s32.f32 %v52
    %v55 = vcvt.s32.f32 %v53
    %vm56 = vcmask 122880
    %v57 = vsel %vm56, %v54, 0.0
    %v58 = vsel %vm56, %v55, 0.0
    %v59 = vadd.f32 %v57, %v58
    %60 = vadd.xlane.f32.xlu0 %v59
    %v61 = vpop.xlane.xlu0 %60
    %v62 = vrot.slane %v61, 4
    %v63 = vadd.f32 %v61, %v62
    %v64 = vrot.slane %v63, 2
    %v65 = vadd.f32 %v63, %v64
    %v66 = vrot.slane %v65, 1
    %v67 = vadd.f32 %v65, %v66
    %s68 = vtos %v67
    %v69 = vld [vmem:[%s1] sm:$0x3f]
    %v70 = vld [vmem:[%s1 + $0x8] sm:$0x3f]
    %vm71 = vcmask 128000
    %v72 = vsel %vm71, %v69, -inf
    %v73 = vrot.slane %v72, 4
    %v74 = vmax.f32 %v72, %v73
    %v75 = vrot.slane %v74, 2
    %v76 = vmax.f32 %v74, %v75
    %v77 = vrot.slane %v76, 1
    %v78 = vmax.f32 %v76, %v77
    %v79 = vsel %vm71, %v70, -inf
    %v80 = vrot.slane %v79, 4
    %v81 = vmax.f32 %v79, %v80
    %v82 = vrot.slane %v81, 2
    %v83 = vmax.f32 %v81, %v82
    %v84 = vrot.slane %v83, 1
    %v85 = vmax.f32 %v83, %v84
    %v86 = vsub.f32 %v69, %v78
    %v87 = vsub.f32 %v70, %v85
    %v88 = vmul.f32 %v86, 1.442695
    %v89 = vpow.pop %v88
    %v90 = vmul.f32 %v87, 1.442695
    %v91 = vpow.pop %v90
    %v92 = vsel %vm71, %v89, 0.0
    %v93 = vrot.slane %v92, 4
    %v94 = vadd.f32 %v92, %v93
    %v95 = vrot.slane %v94, 2
    %v96 = vadd.f32 %v94, %v95
    %v97 = vrot.slane %v96, 1
    %v98 = vadd.f32 %v96, %v97
    %v99 = vsel %vm71, %v91, 0.0
    %v100 = vrot.slane %v99, 4
    %v101 = vadd.f32 %v99, %v100
    %v102 = vrot.slane %v101, 2
    %v103 = vadd.f32 %v101, %v102
    %v104 = vrot.slane %v103, 1
    %v105 = vadd.f32 %v103, %v104
    %v106 = vlog2.pop %v98
    %v107 = vmul.f32 %v106, 0.6931472
    %v108 = vlog2.pop %v105
    %v109 = vmul.f32 %v108, 0.6931472
    %v110 = vadd.f32 %v78, %v107
    %v111 = vadd.f32 %v85, %v109
    %v112 = vsub.f32 %v69, %v110
    %v113 = vsub.f32 %v70, %v111
    %v114 = vperm.slane %v44, 0
    %v115 = vperm.slane %v45, 0
    %vm116 = vcmp.eq.s32.totalorder %v43, %v114
    %vm117 = vcmp.eq.s32.totalorder %v43, %v115
    %v118 = vsel %vm116, %v112, 0.0
    %v119 = vsel %vm117, %v113, 0.0
    %v120 = vsel %vm71, %v118, 0.0
    %v121 = vrot.slane %v120, 4
    %v122 = vadd.f32 %v120, %v121
    %v123 = vrot.slane %v122, 2
    %v124 = vadd.f32 %v122, %v123
    %v125 = vrot.slane %v124, 1
    %v126 = vadd.f32 %v124, %v125
    %v127 = vsel %vm71, %v119, 0.0
    %v128 = vrot.slane %v127, 4
    %v129 = vadd.f32 %v127, %v128
    %v130 = vrot.slane %v129, 2
    %v131 = vadd.f32 %v129, %v130
    %v132 = vrot.slane %v131, 1
    %v133 = vadd.f32 %v131, %v132
    %v134 = vsel %vm50, %v126, 0.0
    %v135 = vsel %vm51, %v133, 0.0
    %v136 = vsel %vm56, %v134, 0.0
    %v137 = vsel %vm56, %v135, 0.0
    %v138 = vadd.f32 %v136, %v137
    %139 = vadd.xlane.f32.xlu0 %v138
    %v140 = vpop.xlane.xlu0 %139
    %v141 = vrot.slane %v140, 4
    %v142 = vadd.f32 %v140, %v141
    %v143 = vrot.slane %v142, 2
    %v144 = vadd.f32 %v142, %v143
    %v145 = vrot.slane %v144, 1
    %v146 = vadd.f32 %v144, %v145
    %s147 = vtos %v146
    %s148 = ssub.f32 0.0, %s147
    %s149 = sld [smem:[#allocation3]]
    %s150 = sadd.f32 %s149, %s148
    %s151 = scalar_lea.smem [#allocation3], 0
    %152 = sst [smem:[%s151]] %s150
    %s153 = sld [smem:[#allocation3 + $0x1]]
    %s154 = sadd.f32 %s153, %s68
    %s155 = scalar_lea.smem [#allocation3], 1
    %156 = sst [smem:[%s155]] %s154
    %v157 = vmax.f32 %v112, -18.420681
    %v158 = vmax.f32 %v113, -18.420681
    %161 = vrot.lane.b32.xlu0 %v157, 1
    %v162 = vpop.permute.xlu0 %161
    %163 = vrot.lane.b32.xlu0 %v158, 1
    %v164 = vpop.permute.xlu0 %163
    %v167 = vsub.f32 %v157, %v162
    %v168 = vsub.f32 %v158, %v164
    %v169 = vmul.f32 %v167, %v167
    %v170 = vmul.f32 %v168, %v168
    %v171 = vmin.f32 %v169, 16.0
    %v172 = vmin.f32 %v170, 16.0
    %v173 = vsel %vm49, %v171, 0.0
    %v174 = vsel %vm49, %v172, 0.0
    %177 = vrot.lane.b32.xlu0 %v173, 127
    %v178 = vpop.permute.xlu0 %177
    %179 = vrot.lane.b32.xlu0 %v174, 127
    %v180 = vpop.permute.xlu0 %179
    %vm183 = vcmask 119808
    %v184 = vsel %vm183, %v178, 0.0
    %v185 = vsel %vm183, %v180, 0.0
    %v186 = vadd.f32 %v184, %v185
    %187 = vadd.xlane.f32.xlu0 %v186
    %v188 = vpop.xlane.xlu0 %187
    %v189 = vrot.slane %v188, 4
    %v190 = vadd.f32 %v188, %v189
    %v191 = vrot.slane %v190, 2
    %v192 = vadd.f32 %v190, %v191
    %v193 = vrot.slane %v192, 1
    %v194 = vadd.f32 %v192, %v193
    %s195 = vtos %v194
    %v196 = vld [vmem:[#allocation2] sm:$0x3f]
    %v197 = vld [vmem:[#allocation2 + $0x8] sm:$0x3f]
    %v198 = vsub.f32 %v157, %v196
    %v199 = vsub.f32 %v158, %v197
    %v200 = vmul.f32 %v198, %v198
    %v201 = vmul.f32 %v199, %v199
    %v202 = vmin.f32 %v200, 16.0
    %v203 = vmin.f32 %v201, 16.0
    %p204 = scmp.ge.s32.totalorder %s15, 1
    %p205 = scmp.lt.s32.totalorder %s15, 16
    %p206 = pnand %p204, %p205
    %p207 = pneg %p206
    %vm208 = vcmask 5120
    %v209 = vsel %vm208, %v202, 0.0
    %v210 = vsel %vm208, %v203, 0.0
    %v211 = vadd.f32 %v209, %v210
    %212 = vadd.xlane.f32.xlu0 %v211
    %v213 = vpop.xlane.xlu0 %212
    %v214 = vrot.slane %v213, 4
    %v215 = vadd.f32 %v213, %v214
    %v216 = vrot.slane %v215, 2
    %v217 = vadd.f32 %v215, %v216
    %v218 = vrot.slane %v217, 1
    %v219 = vadd.f32 %v217, %v218
    %s220 = vtos %v219
    %s221 = scalar_select %p207, %s220, 0.0
    %s222 = sadd.f32 %s195, %s221
    %s223 = sld [smem:[#allocation3 + $0x2]]
    %s224 = sadd.f32 %s223, %s222
    %s225 = scalar_lea.smem [#allocation3], 2
    %226 = sst [smem:[%s225]] %s224
    %227 = vrot.lane.b32.xlu0 %v157, 113
    %v228 = vpop.permute.xlu0 %227
    %229 = vrot.lane.b32.xlu0 %v158, 113
    %v230 = vpop.permute.xlu0 %229
    %233 = vst.msk [vmem:[#allocation2] sm:$0x3f] %vm208, %v228
    %234 = vst.msk [vmem:[#allocation2 + $0x8] sm:$0x3f] %vm208, %v230
    %v235 = vld [vmem:[%s2] sm:$0x3f]
    %v236 = vld [vmem:[%s2 + $0x8] sm:$0x3f]
    %v237 = vsel %vm71, %v235, -inf
    %v238 = vrot.slane %v237, 4
    %v239 = vmax.f32 %v237, %v238
    %v240 = vrot.slane %v239, 2
    %v241 = vmax.f32 %v239, %v240
    %v242 = vrot.slane %v241, 1
    %v243 = vmax.f32 %v241, %v242
    %v244 = vsel %vm71, %v236, -inf
    %v245 = vrot.slane %v244, 4
    %v246 = vmax.f32 %v244, %v245
    %v247 = vrot.slane %v246, 2
    %v248 = vmax.f32 %v246, %v247
    %v249 = vrot.slane %v248, 1
    %v250 = vmax.f32 %v248, %v249
    %v251 = vsub.f32 %v235, %v243
    %v252 = vsub.f32 %v236, %v250
    %v253 = vmul.f32 %v251, 1.442695
    %v254 = vpow.pop %v253
    %v255 = vmul.f32 %v252, 1.442695
    %v256 = vpow.pop %v255
    %v257 = vsel %vm71, %v254, 0.0
    %v258 = vrot.slane %v257, 4
    %v259 = vadd.f32 %v257, %v258
    %v260 = vrot.slane %v259, 2
    %v261 = vadd.f32 %v259, %v260
    %v262 = vrot.slane %v261, 1
    %v263 = vadd.f32 %v261, %v262
    %v264 = vsel %vm71, %v256, 0.0
    %v265 = vrot.slane %v264, 4
    %v266 = vadd.f32 %v264, %v265
    %v267 = vrot.slane %v266, 2
    %v268 = vadd.f32 %v266, %v267
    %v269 = vrot.slane %v268, 1
    %v270 = vadd.f32 %v268, %v269
    %v271 = vlog2.pop %v263
    %v272 = vmul.f32 %v271, 0.6931472
    %v273 = vlog2.pop %v270
    %v274 = vmul.f32 %v273, 0.6931472
    %v275 = vadd.f32 %v243, %v272
    %v276 = vadd.f32 %v250, %v274
    %v277 = vsub.f32 %v235, %v275
    %v278 = vsub.f32 %v236, %v276
    %v279 = vsel %vm116, %v277, 0.0
    %v280 = vsel %vm117, %v278, 0.0
    %v281 = vsel %vm71, %v279, 0.0
    %v282 = vrot.slane %v281, 4
    %v283 = vadd.f32 %v281, %v282
    %v284 = vrot.slane %v283, 2
    %v285 = vadd.f32 %v283, %v284
    %v286 = vrot.slane %v285, 1
    %v287 = vadd.f32 %v285, %v286
    %v288 = vsel %vm71, %v280, 0.0
    %v289 = vrot.slane %v288, 4
    %v290 = vadd.f32 %v288, %v289
    %v291 = vrot.slane %v290, 2
    %v292 = vadd.f32 %v290, %v291
    %v293 = vrot.slane %v292, 1
    %v294 = vadd.f32 %v292, %v293
    %v295 = vsel %vm50, %v287, 0.0
    %v296 = vsel %vm51, %v294, 0.0
    %v297 = vsel %vm56, %v295, 0.0
    %v298 = vsel %vm56, %v296, 0.0
    %v299 = vadd.f32 %v297, %v298
    %300 = vadd.xlane.f32.xlu0 %v299
    %v301 = vpop.xlane.xlu0 %300
    %v302 = vrot.slane %v301, 4
    %v303 = vadd.f32 %v301, %v302
    %v304 = vrot.slane %v303, 2
    %v305 = vadd.f32 %v303, %v304
    %v306 = vrot.slane %v305, 1
    %v307 = vadd.f32 %v305, %v306
    %s308 = vtos %v307
    %s309 = ssub.f32 0.0, %s308
    %s310 = sld [smem:[#allocation3 + $0x80]]
    %s311 = sadd.f32 %s310, %s309
    %s312 = scalar_lea.smem [#allocation3], 128
    %313 = sst [smem:[%s312]] %s311
    %s314 = sld [smem:[#allocation3 + $0x81]]
    %s315 = sadd.f32 %s314, %s68
    %s316 = scalar_lea.smem [#allocation3], 129
    %317 = sst [smem:[%s316]] %s315
    %v318 = vmax.f32 %v277, -18.420681
    %v319 = vmax.f32 %v278, -18.420681
    %322 = vrot.lane.b32.xlu0 %v318, 1
    %v323 = vpop.permute.xlu0 %322
    %324 = vrot.lane.b32.xlu0 %v319, 1
    %v325 = vpop.permute.xlu0 %324
    %v328 = vsub.f32 %v318, %v323
    %v329 = vsub.f32 %v319, %v325
    %v330 = vmul.f32 %v328, %v328
    %v331 = vmul.f32 %v329, %v329
    %v332 = vmin.f32 %v330, 16.0
    %v333 = vmin.f32 %v331, 16.0
    %v334 = vsel %vm49, %v332, 0.0
    %v335 = vsel %vm49, %v333, 0.0
    %338 = vrot.lane.b32.xlu0 %v334, 127
    %v339 = vpop.permute.xlu0 %338
    %340 = vrot.lane.b32.xlu0 %v335, 127
    %v341 = vpop.permute.xlu0 %340
    %v344 = vsel %vm183, %v339, 0.0
    %v345 = vsel %vm183, %v341, 0.0
    %v346 = vadd.f32 %v344, %v345
    %347 = vadd.xlane.f32.xlu0 %v346
    %v348 = vpop.xlane.xlu0 %347
    %v349 = vrot.slane %v348, 4
    %v350 = vadd.f32 %v348, %v349
    %v351 = vrot.slane %v350, 2
    %v352 = vadd.f32 %v350, %v351
    %v353 = vrot.slane %v352, 1
    %v354 = vadd.f32 %v352, %v353
    %s355 = vtos %v354
    %s356 = scalar_lea.vmem [#allocation2], 16
    %v357 = vld [vmem:[%s356] sm:$0x3f]
    %v358 = vld [vmem:[%s356 + $0x8] sm:$0x3f]
    %v359 = vsub.f32 %v318, %v357
    %v360 = vsub.f32 %v319, %v358
    %v361 = vmul.f32 %v359, %v359
    %v362 = vmul.f32 %v360, %v360
    %v363 = vmin.f32 %v361, 16.0
    %v364 = vmin.f32 %v362, 16.0
    %v365 = vsel %vm208, %v363, 0.0
    %v366 = vsel %vm208, %v364, 0.0
    %v367 = vadd.f32 %v365, %v366
    %368 = vadd.xlane.f32.xlu0 %v367
    %v369 = vpop.xlane.xlu0 %368
    %v370 = vrot.slane %v369, 4
    %v371 = vadd.f32 %v369, %v370
    %v372 = vrot.slane %v371, 2
    %v373 = vadd.f32 %v371, %v372
    %v374 = vrot.slane %v373, 1
    %v375 = vadd.f32 %v373, %v374
    %s376 = vtos %v375
    %s377 = scalar_select %p207, %s376, 0.0
    %s378 = sadd.f32 %s355, %s377
    %s379 = sld [smem:[#allocation3 + $0x82]]
    %s380 = sadd.f32 %s379, %s378
    %s381 = scalar_lea.smem [#allocation3], 130
    %382 = sst [smem:[%s381]] %s380
    %383 = vrot.lane.b32.xlu0 %v318, 113
    %v384 = vpop.permute.xlu0 %383
    %385 = vrot.lane.b32.xlu0 %v319, 113
    %v386 = vpop.permute.xlu0 %385
    %389 = vst.msk [vmem:[%s356] sm:$0x3f] %vm208, %v384
    %390 = vst.msk [vmem:[%s356 + $0x8] sm:$0x3f] %vm208, %v386
    // Predicated region
    $region18: #{tpu_custom_call.1} parent=1 // pred_check
      _
    $region19: #{tpu_custom_call.1} parent=1 // pred_check_branch
      %392 = sbr.rel (0) target = $region21
    $region20: #{tpu_custom_call.1} parent=1 // pred_region
      %394 = vsyncadd [#allocation4], 0
      %s396 = sshll.u32 %s3, 4
      %s397 = int_to_ptr.hbm [resolvable:$true] %s396
      %399 = dma.smem_to_hbm [#allocation3], 32, %s397, [#allocation4]
    $region21: #{tpu_custom_call.1} parent=1 // pred_fallthru
      _
    // Predicated region
    $region22: #{tpu_custom_call.1} parent=1 // pred_check
      _
    $region23: #{tpu_custom_call.1} parent=1 // pred_check_branch
      %401 = sbr.rel (0) target = $region25
    $region24: #{tpu_custom_call.1} parent=1 // pred_region
      %403 = dma.done [#allocation4], 32
    $region25: #{tpu_custom_call.1} parent=1 // pred_fallthru
      _
    %404 = sfence
    %405 = vsyncpa [#allocation4], 1

</llo_original>
